<compile_context>
chip_gen: v5e
topology: v5e:2x2
jax: 0.10.0
libtpu: 0.0.40
codegen_flags: <defaults>
</compile_context>

<pallas_src>
import jax
import jax.numpy as jnp
from jax.experimental import pallas as pl
from jax.experimental.pallas import tpu as pltpu


def _noise_injection_kernel(x_ref, w_ref, n_ref, out_ref):
    # x_ref   : (1, tc, ts)  current x tile
    # w_ref   : (1, tc, 1)   per-channel weights for this C-tile
    # n_ref   : (1, 1, ts)   noise tile (revisit-elided across C-tiles)
    # out_ref : (1, tc, ts)
    x = x_ref[...]
    w = w_ref[...]            # broadcasts along lanes
    n = n_ref[...]            # broadcasts along sublanes
    out_ref[...] = (x + w * n).astype(out_ref.dtype)


def _default_block_target():
    """~2 MiB blocks on v5e and older (16 MiB default scoped VMEM); ~4 MiB on
    v6e/v7x (32 MiB default scoped VMEM, 0.35us/step overhead is a larger
    fraction of the faster HBM stream)."""
    try:
        kind = jax.devices()[0].device_kind.lower()
    except Exception:
        kind = ""
    if ("v6" in kind) or ("v7" in kind):
        return 4 << 20
    return 2 << 20


def _pick_tiles(C, HW_pad, dtype_bytes, target_block_bytes):
    """Pick (tc, ts) tile sizes for the trailing (C, HW_pad) dims.

    ts is a multiple of 128 dividing HW_pad (HW_pad is pre-padded to a 128
    multiple).  tc is a multiple of 8 dividing C, or C itself when C % 8 != 0
    (full-dim fallback, the only legal option then).  The x block (1, tc, ts)
    stays within `target_block_bytes` whenever the constraints allow, so
    double-buffered in+out blocks fit the default scoped VMEM on all TPU
    generations.
    """
    tc_min = 8 if C % 8 == 0 else C            # smallest legal channel tile
    # Spatial tile, budgeted against the smallest legal channel tile.
    max_ts = max(128, target_block_bytes // (tc_min * dtype_bytes))
    ts, t = 128, 128
    limit = min(HW_pad, max_ts)
    while t <= limit:
        if HW_pad % t == 0:
            ts = t
        t += 128
    # Channel tile, budgeted against the chosen spatial tile.
    if C % 8 == 0:
        budget_c = max(8, target_block_bytes // (ts * dtype_bytes))
        tc, t = 8, 8
        limit = min(C, budget_c)
        while t <= limit:
            if C % t == 0:
                tc = t
            t += 8
    else:
        tc = C                                  # full dim; ts already budgeted vs C
    return tc, ts


@jax.jit
def noise_injection_per_channel(x, weight, noise_std, key):
    """x: (B, C, H, W), weight: (1, C, 1, 1), noise_std: scalar (traced),
    key: jax PRNG key.  Returns (out (B,C,H,W), noise (B,1,H,W))."""
    B, C, H, W = x.shape
    HW = H * W
    HW_pad = ((HW + 127) // 128) * 128          # lane-dense output width
    itemsize = jnp.dtype(x.dtype).itemsize

    # Noise generated once per batch row; the returned noise and the noise the
    # kernel consumes are bit-identical.
    noise = (jax.random.normal(key, (B, 1, HW), dtype=jnp.float32)
             * jnp.asarray(noise_std, jnp.float32)).astype(x.dtype)

    x2 = x.reshape(B, C, HW)
    n2 = noise
    if HW_pad != HW:
        pad = HW_pad - HW
        x2 = jnp.pad(x2, ((0, 0), (0, 0), (0, pad)))
        n2 = jnp.pad(n2, ((0, 0), (0, 0), (0, pad)))
    w2 = weight.reshape(1, C, 1).astype(x.dtype)

    tc, ts = _pick_tiles(C, HW_pad, itemsize, _default_block_target())
    # C-tile axis innermost -> noise block index constant across consecutive
    # steps -> its DMA is revisit-elided (read once per (batch, spatial tile)).
    grid = (B, HW_pad // ts, C // tc)

    grid_spec = pltpu.PrefetchScalarGridSpec(
        num_scalar_prefetch=0,
        grid=grid,
        in_specs=[
            pl.BlockSpec((1, tc, ts), lambda b, s, c: (b, c, s)),   # x
            pl.BlockSpec((1, tc, 1), lambda b, s, c: (0, c, 0)),    # weight
            pl.BlockSpec((1, 1, ts), lambda b, s, c: (b, 0, s)),    # noise
        ],
        out_specs=pl.BlockSpec((1, tc, ts), lambda b, s, c: (b, c, s)),
    )

    cost = pl.CostEstimate(
        flops=2 * B * C * HW_pad,
        transcendentals=0,
        bytes_accessed=(2 * B * C * HW_pad + B * HW_pad + C) * itemsize,
    )

    out2 = pl.pallas_call(
        _noise_injection_kernel,
        out_shape=jax.ShapeDtypeStruct((B, C, HW_pad), x.dtype),
        grid_spec=grid_spec,
        compiler_params=pltpu.CompilerParams(
            dimension_semantics=("parallel", "parallel", "parallel"),
        ),
        cost_estimate=cost,
    )(x2, w2, n2)

    if HW_pad != HW:
        out2 = out2[:, :, :HW]
    return out2.reshape(B, C, H, W), noise.reshape(B, 1, H, W)


if __name__ == "__main__":
    B, C, H, W = 2, 4, 16, 16
    noise_std = 0.5

    key = jax.random.PRNGKey(0)
    kx, kw, kn = jax.random.split(key, 3)
    x = jax.random.normal(kx, (B, C, H, W), dtype=jnp.float32)
    # nn.Parameter is zeros at init; use small non-zero values so the
    # broadcasted multiply-add is actually exercised.
    weight = jax.random.normal(kw, (1, C, 1, 1), dtype=jnp.float32) * 0.1

    out, noise = noise_injection_per_channel(x, weight, noise_std, kn)
    out = jax.block_until_ready(out)
    noise = jax.block_until_ready(noise)

    # Correctness: out must equal x + weight * noise (with the noise the call
    # returned), reproducing the PyTorch broadcasting semantics.
    ref = x + weight * noise
    assert out.shape == (B, C, H, W)
    assert noise.shape == (B, 1, H, W)
    assert jnp.allclose(out, ref, atol=1e-6, rtol=1e-6), "mismatch vs reference"
    # Sanity: noise is not degenerate and has roughly the requested scale.
    assert float(jnp.std(noise)) > 0.0

    print("KERNEL_OK")
</pallas_src>

<mosaic_0001>
module attributes {stable_mosaic.version = 11 : i64} {
  func.func @_noise_injection_kernel(%arg0: i32, %arg1: i32, %arg2: i32, %arg3: memref<1x4x256xf32, #tpu.memory_space<vmem>>, %arg4: memref<1x4x1xf32, #tpu.memory_space<vmem>>, %arg5: memref<1x1x256xf32, #tpu.memory_space<vmem>>, %arg6: memref<1x4x256xf32, #tpu.memory_space<vmem>>) attributes {dimension_semantics = [#tpu.dimension_semantics<parallel>, #tpu.dimension_semantics<parallel>, #tpu.dimension_semantics<parallel>], iteration_bounds = array<i64: 2, 1, 1>, scalar_prefetch = 0 : i64, scratch_operands = 0 : i64, tpu.core_type = #tpu.core_type<tc>, window_params = [{transform_indices = @transform_0, window_bounds = array<i64: 1, 4, 256>}, {transform_indices = @transform_1, window_bounds = array<i64: 1, 4, 1>}, {transform_indices = @transform_2, window_bounds = array<i64: 1, 1, 256>}, {transform_indices = @transform_3, window_bounds = array<i64: 1, 4, 256>}]} {
    %c0 = arith.constant 0 : index
    %c0_0 = arith.constant 0 : index
    %c0_1 = arith.constant 0 : index
    %0 = vector.load %arg3[%c0, %c0_0, %c0_1] : memref<1x4x256xf32, #tpu.memory_space<vmem>>, vector<1x4x256xf32>
    %c0_2 = arith.constant 0 : index
    %c0_3 = arith.constant 0 : index
    %c0_4 = arith.constant 0 : index
    %1 = vector.load %arg4[%c0_2, %c0_3, %c0_4] : memref<1x4x1xf32, #tpu.memory_space<vmem>>, vector<1x4x1xf32>
    %c0_5 = arith.constant 0 : index
    %c0_6 = arith.constant 0 : index
    %c0_7 = arith.constant 0 : index
    %2 = vector.load %arg5[%c0_5, %c0_6, %c0_7] : memref<1x1x256xf32, #tpu.memory_space<vmem>>, vector<1x1x256xf32>
    %3 = vector.broadcast %1 : vector<1x4x1xf32> to vector<1x4x256xf32>
    %4 = vector.broadcast %2 : vector<1x1x256xf32> to vector<1x4x256xf32>
    %5 = arith.mulf %3, %4 : vector<1x4x256xf32>
    %6 = arith.addf %0, %5 : vector<1x4x256xf32>
    %c0_8 = arith.constant 0 : index
    %c0_9 = arith.constant 0 : index
    %c0_10 = arith.constant 0 : index
    %7 = vector.load %arg6[%c0_8, %c0_9, %c0_10] : memref<1x4x256xf32, #tpu.memory_space<vmem>>, vector<1x4x256xf32>
    tpu.vector_store %arg6[%c0_8, %c0_9, %c0_10], %6 {strides = array<i32>} : memref<1x4x256xf32, #tpu.memory_space<vmem>>, vector<1x4x256xf32>,
    return
  }
  func.func @transform_0(%arg0: i32, %arg1: i32, %arg2: i32) -> (i32, i32, i32) {
    %c0_i32 = arith.constant 0 : i32
    return %arg0, %arg2, %arg1 : i32, i32, i32
  }
  func.func @transform_1(%arg0: i32, %arg1: i32, %arg2: i32) -> (i32, i32, i32) {
    %c0_i32 = arith.constant 0 : i32
    %c0_i32_0 = arith.constant 0 : i32
    %c0_i32_1 = arith.constant 0 : i32
    return %c0_i32, %arg2, %c0_i32_0 : i32, i32, i32
  }
  func.func @transform_2(%arg0: i32, %arg1: i32, %arg2: i32) -> (i32, i32, i32) {
    %c0_i32 = arith.constant 0 : i32
    %c0_i32_0 = arith.constant 0 : i32
    return %arg0, %c0_i32, %arg1 : i32, i32, i32
  }
  func.func @transform_3(%arg0: i32, %arg1: i32, %arg2: i32) -> (i32, i32, i32) {
    %c0_i32 = arith.constant 0 : i32
    return %arg0, %arg2, %arg1 : i32, i32, i32
  }
}

</mosaic_0001>

<llo_original>
// kernel: noise_injection_per_channel.1
$region0: #{noise_injection_per_channel.1}
  #allocation0 [shape = 'u32[]', space=smem, size = 0x4, offset = 0x4, fixed_abs, tag = 'smem constant byte address 0x4 - core index']
  #allocation1 [shape = 'u32[72,128]{1,0:T(1,128)}', space=vmem, size = 0x9000, scoped, tag = 'internal scratch']
  %s0 = inlined_call_operand.vmem [shape: f32[2,4,256], index: 0, kind: input, shape index: {}]
  %s1 = inlined_call_operand.vmem [shape: f32[1,4,1], index: 1, kind: input, shape index: {}]
  %s2 = inlined_call_operand.vmem [shape: f32[2,1,256], index: 2, kind: input, shape index: {}]
  %s3 = inlined_call_operand.vmem [shape: f32[2,4,256], index: 3, kind: output, shape index: {}]
  %s4 = sld [smem:[#allocation0]]
  $region45: #{noise_injection_per_channel.1} parent=0
    _
  %s6 = ssub.s32 1, %s4
  %s7 = scalar_select 0, %s6, %s4
  loop: start=0, step=1, limit=4
  $region2: #{noise_injection_per_channel.1} parent=0 // loop_pre_header
    _
  $region3: #{noise_injection_per_channel.1} parent=0 // loop_header
    %s9 = sphi 0, %s13
    %p10 = scmp.ge.s32.totalorder %s9, 4
    %s16 = sphi 0, %s35
    %s17 = sphi 0, %s31
    %s18 = sphi 0, %s27
    %s19 = sphi 0, %s16
    %s20 = sphi 0, %s17
    %s21 = sphi 0, %s18
    %s22 = sphi 0, %s19
    %s23 = sphi 0, %s20
    %s24 = sphi 0, %s21
    %s42 = sphi 0, %s44
    %s45 = sphi 0, %s42
    %s46 = sphi 0, %s45
    %s62 = sphi 0, %s46
    %s68 = sphi 0, %s70
    %s71 = sphi 0, %s68
    %s72 = sphi 0, %s71
    %s88 = sphi 0, %s72
    %s96 = sphi 0, %s98
    %s99 = sphi 0, %s96
    %s100 = sphi 0, %s99
    %s116 = sphi 0, %s100
    %s126 = sphi 0, %s128
    %s129 = sphi 0, %s126
    %s130 = sphi 0, %s129
    %s146 = sphi 0, %s130
  $region4: #{noise_injection_per_channel.1} parent=0 // loop_header_branch
    %12 = sbr.rel (%p10) target = $region8
  $region5: #{noise_injection_per_channel.1} parent=0 // loop_body
    %s14 = ssub.s32 %s9, 1
    %s15 = ssub.s32 %s9, 2
    %s25 = sadd.s32 1, %s18
    %p26 = scmp.ge.s32.totalorder %s25, 1
    %s27 = scalar_select %p26, 0, %s25
    %s28 = sadd.s32 1, %s17
    %s29 = scalar_select %p26, %s28, %s17
    %p30 = scmp.ge.s32.totalorder %s29, 1
    %s31 = scalar_select %p30, 0, %s29
    %s32 = sadd.s32 1, %s16
    %s33 = scalar_select %p30, %s32, %s16
    %p34 = scmp.ge.s32.totalorder %s33, 2
    %s35 = scalar_select %p34, 0, %s33
    %s36 = ssub.s32 %s16, %s35
    %s37 = ssub.s32 %s18, %s27
    %s38 = sor.u32 %s36, %s37
    %s39 = ssub.s32 %s17, %s31
    %s40 = sor.u32 %s38, %s39
    %p41 = scmp.eq.s32.totalorder %s40, 0
    %s43 = sadd.s32 %s42, 1
    %s44 = scalar_select %p41, %s42, %s43
    %p47 = pneg %p41
    %p48 = scmp.eq.s32.totalorder %s9, 1
    %p49 = por %p47, %p48
    %p50 = scmp.ne.s32.totalorder %s42, %s45
    %p51 = scmp.eq.s32.totalorder %s9, 0
    %p52 = por %p50, %p51
    %p53 = scmp.ne.s32.totalorder %s42, %s45
    %p54 = scmp.eq.s32.totalorder %s14, 1
    %p55 = por %p53, %p54
    %p56 = scmp.ne.s32.totalorder %s45, %s46
    %p57 = scmp.eq.s32.totalorder %s14, 0
    %p58 = por %p56, %p57
    %p59 = scmp.ne.s32.totalorder %s45, %s46
    %p60 = scmp.eq.s32.totalorder %s15, 1
    %p61 = por %p59, %p60
    %p63 = scmp.ne.s32.totalorder %s46, %s62
    %p64 = scmp.eq.s32.totalorder %s15, 0
    %p65 = por %p63, %p64
    %s66 = ssub.s32 %s18, %s27
    %p67 = scmp.eq.s32.totalorder %s66, 0
    %s69 = sadd.s32 %s68, 1
    %s70 = scalar_select %p67, %s68, %s69
    %p73 = pneg %p67
    %p74 = scmp.eq.s32.totalorder %s9, 1
    %p75 = por %p73, %p74
    %p76 = scmp.ne.s32.totalorder %s68, %s71
    %p77 = scmp.eq.s32.totalorder %s9, 0
    %p78 = por %p76, %p77
    %p79 = scmp.ne.s32.totalorder %s68, %s71
    %p80 = scmp.eq.s32.totalorder %s14, 1
    %p81 = por %p79, %p80
    %p82 = scmp.ne.s32.totalorder %s71, %s72
    %p83 = scmp.eq.s32.totalorder %s14, 0
    %p84 = por %p82, %p83
    %p85 = scmp.ne.s32.totalorder %s71, %s72
    %p86 = scmp.eq.s32.totalorder %s15, 1
    %p87 = por %p85, %p86
    %p89 = scmp.ne.s32.totalorder %s72, %s88
    %p90 = scmp.eq.s32.totalorder %s15, 0
    %p91 = por %p89, %p90
    %s92 = ssub.s32 %s16, %s35
    %s93 = ssub.s32 %s17, %s31
    %s94 = sor.u32 %s92, %s93
    %p95 = scmp.eq.s32.totalorder %s94, 0
    %s97 = sadd.s32 %s96, 1
    %s98 = scalar_select %p95, %s96, %s97
    %p101 = pneg %p95
    %p102 = scmp.eq.s32.totalorder %s9, 1
    %p103 = por %p101, %p102
    %p104 = scmp.ne.s32.totalorder %s96, %s99
    %p105 = scmp.eq.s32.totalorder %s9, 0
    %p106 = por %p104, %p105
    %p107 = scmp.ne.s32.totalorder %s96, %s99
    %p108 = scmp.eq.s32.totalorder %s14, 1
    %p109 = por %p107, %p108
    %p110 = scmp.ne.s32.totalorder %s99, %s100
    %p111 = scmp.eq.s32.totalorder %s14, 0
    %p112 = por %p110, %p111
    %p113 = scmp.ne.s32.totalorder %s99, %s100
    %p114 = scmp.eq.s32.totalorder %s15, 1
    %p115 = por %p113, %p114
    %p117 = scmp.ne.s32.totalorder %s100, %s116
    %p118 = scmp.eq.s32.totalorder %s15, 0
    %p119 = por %p117, %p118
    %s120 = ssub.s32 %s16, %s35
    %s121 = ssub.s32 %s18, %s27
    %s122 = sor.u32 %s120, %s121
    %s123 = ssub.s32 %s17, %s31
    %s124 = sor.u32 %s122, %s123
    %p125 = scmp.eq.s32.totalorder %s124, 0
    %s127 = sadd.s32 %s126, 1
    %s128 = scalar_select %p125, %s126, %s127
    %p131 = pneg %p125
    %p132 = scmp.eq.s32.totalorder %s9, 1
    %p133 = por %p131, %p132
    %p134 = scmp.ne.s32.totalorder %s126, %s129
    %p135 = scmp.eq.s32.totalorder %s9, 0
    %p136 = por %p134, %p135
    %p137 = scmp.ne.s32.totalorder %s126, %s129
    %p138 = scmp.eq.s32.totalorder %s14, 1
    %p139 = por %p137, %p138
    %p140 = scmp.ne.s32.totalorder %s129, %s130
    %p141 = scmp.eq.s32.totalorder %s14, 0
    %p142 = por %p140, %p141
    %p143 = scmp.ne.s32.totalorder %s129, %s130
    %p144 = scmp.eq.s32.totalorder %s15, 1
    %p145 = por %p143, %p144
    %p147 = scmp.ne.s32.totalorder %s130, %s146
    %p148 = scmp.eq.s32.totalorder %s15, 0
    %p149 = por %p147, %p148
    %p150 = scmp.le.s32.totalorder 1, %s9
    %p151 = scmp.lt.s32.totalorder %s9, 3
    %p152 = pnand %p150, %p151
    %p153 = pneg %p152
    // Predicated region
    $region9: #{noise_injection_per_channel.1} parent=5 // pred_check
      _
    $region10: #{noise_injection_per_channel.1} parent=5 // pred_check_branch
      %155 = sbr.rel (%p152) target = $region12
    $region11: #{noise_injection_per_channel.1} parent=5 // pred_region
      %s156 = ssub.s32 %s9, 1
      // Predicated region
      $region13: #{noise_injection_per_channel.1} parent=11 // pred_check
        %p157 = pneg %p84
      $region14: #{noise_injection_per_channel.1} parent=11 // pred_check_branch
        %159 = sbr.rel (%p157) target = $region16
      $region15: #{noise_injection_per_channel.1} parent=11 // pred_region
        %p160 = scmp.lt.s32.totalorder %s21, 0
        %s161 = scalar_select %p160, %s21, 0
        %s162 = smul.addr %s161, 4
        %s163 = scalar_lea.vmem %s1, %s162
      $region16: #{noise_injection_per_channel.1} parent=11 // pred_fallthru
        _
    $region12: #{noise_injection_per_channel.1} parent=5 // pred_fallthru
      _
    %p164 = scmp.lt.s32.totalorder %s9, 2
    // Predicated region
    $region17: #{noise_injection_per_channel.1} parent=5 // pred_check
      %p165 = pneg %p164
    $region18: #{noise_injection_per_channel.1} parent=5 // pred_check_branch
      %167 = sbr.rel (%p165) target = $region20
    $region19: #{noise_injection_per_channel.1} parent=5 // pred_region
      // Predicated region
      $region21: #{noise_injection_per_channel.1} parent=19 // pred_check
        %p168 = pneg %p52
      $region22: #{noise_injection_per_channel.1} parent=19 // pred_check_branch
        %170 = sbr.rel (%p168) target = $region24
      $region23: #{noise_injection_per_channel.1} parent=19 // pred_region
        %s171 = smul.u32 2, %s17
        %p172 = scmp.lt.s32.totalorder %s16, 1
        %s173 = scalar_select %p172, %s16, 1
        %p174 = scmp.lt.s32.totalorder %s18, 0
        %s175 = scalar_select %p174, %s18, 0
        %p176 = scmp.lt.s32.totalorder %s171, 1
        %s177 = scalar_select %p176, %s171, 1
        %s178 = smul.addr %s175, 2
        %s179 = sadd.s32 %s177, %s178
        %s180 = smul.addr %s173, 2
        %s181 = sadd.s32 %s179, %s180
        %s182 = smul.addr %s181, 4
        %s183 = scalar_lea.vmem %s0, %s182
        %s184 = smul.u32 2, %s17
      $region24: #{noise_injection_per_channel.1} parent=19 // pred_fallthru
        _
      // Predicated region
      $region25: #{noise_injection_per_channel.1} parent=19 // pred_check
        %p185 = pneg %p106
      $region26: #{noise_injection_per_channel.1} parent=19 // pred_check_branch
        %187 = sbr.rel (%p185) target = $region28
      $region27: #{noise_injection_per_channel.1} parent=19 // pred_region
        %s188 = smul.u32 2, %s17
        %p189 = scmp.lt.s32.totalorder %s16, 1
        %s190 = scalar_select %p189, %s16, 1
        %p191 = scmp.lt.s32.totalorder %s188, 1
        %s192 = scalar_select %p191, %s188, 1
        %s193 = smul.addr %s190, 2
        %s194 = sadd.s32 %s192, %s193
        %s195 = scalar_lea.vmem %s2, %s194
        %s196 = smul.u32 2, %s17
      $region28: #{noise_injection_per_channel.1} parent=19 // pred_fallthru
        _
    $region20: #{noise_injection_per_channel.1} parent=5 // pred_fallthru
      _
    %p197 = scmp.le.s32.totalorder 1, %s9
    %p198 = scmp.lt.s32.totalorder %s9, 3
    %p199 = pnand %p197, %p198
    %p200 = pneg %p199
    // Predicated region
    $region29: #{noise_injection_per_channel.1} parent=5 // pred_check
      _
    $region30: #{noise_injection_per_channel.1} parent=5 // pred_check_branch
      %202 = sbr.rel (%p199) target = $region32
    $region31: #{noise_injection_per_channel.1} parent=5 // pred_region
      %s203 = ssub.s32 %s9, 1
      %s204 = smul.u32 2, %s20
      %p205 = scmp.lt.s32.totalorder %s19, 1
      %s206 = scalar_select %p205, %s19, 1
      %p207 = scmp.lt.s32.totalorder %s21, 0
      %s208 = scalar_select %p207, %s21, 0
      %p209 = scmp.lt.s32.totalorder %s204, 1
      %s210 = scalar_select %p209, %s204, 1
      %s211 = smul.addr %s208, 2
      %s212 = sadd.s32 %s210, %s211
      %s213 = smul.addr %s206, 2
      %s214 = sadd.s32 %s212, %s213
      %s215 = smul.addr %s214, 4
      %s216 = scalar_lea.vmem %s0, %s215
      %p217 = pneg %p58
      %p218 = pneg %p55
      %p219 = scmp.lt.s32.totalorder %s21, 0
      %s220 = scalar_select %p219, %s21, 0
      %s221 = smul.addr %s220, 4
      %s222 = scalar_lea.vmem %s1, %s221
      %p223 = pneg %p84
      %p224 = pneg %p81
      %s225 = smul.u32 2, %s20
      %p226 = scmp.lt.s32.totalorder %s19, 1
      %s227 = scalar_select %p226, %s19, 1
      %p228 = scmp.lt.s32.totalorder %s225, 1
      %s229 = scalar_select %p228, %s225, 1
      %s230 = smul.addr %s227, 2
      %s231 = sadd.s32 %s229, %s230
      %s232 = scalar_lea.vmem %s2, %s231
      %p233 = pneg %p112
      %p234 = pneg %p109
      %p235 = pneg %p142
      %p236 = pneg %p139
      %s237 = smul.u32 2, %s20
      %p238 = scmp.lt.s32.totalorder %s19, 1
      %s239 = scalar_select %p238, %s19, 1
      %p240 = scmp.lt.s32.totalorder %s21, 0
      %s241 = scalar_select %p240, %s21, 0
      %p242 = scmp.lt.s32.totalorder %s237, 1
      %s243 = scalar_select %p242, %s237, 1
      %s244 = smul.addr %s241, 2
      %s245 = sadd.s32 %s243, %s244
      %s246 = smul.addr %s239, 2
      %s247 = sadd.s32 %s245, %s246
      %s248 = smul.addr %s247, 4
      %s249 = scalar_lea.vmem %s3, %s248
      %s250 = smul.u32 2, %s20
      %p251 = scmp.lt.s32.totalorder %s19, 1
      %s252 = scalar_select %p251, %s19, 1
      %p253 = scmp.lt.s32.totalorder %s21, 0
      %s254 = scalar_select %p253, %s21, 0
      %p255 = scmp.lt.s32.totalorder %s250, 1
      %s256 = scalar_select %p255, %s250, 1
      %s257 = smul.addr %s254, 2
      %s258 = sadd.s32 %s256, %s257
      %s259 = smul.addr %s252, 2
      %s260 = sadd.s32 %s258, %s259
      %s261 = smul.addr %s260, 4
      %s262 = scalar_lea.vmem %s0, %s261
      %s263 = smul.u32 2, %s20
      %p264 = scmp.lt.s32.totalorder %s21, 0
      %s265 = scalar_select %p264, %s21, 0
      %s266 = smul.addr %s265, 4
      %s267 = scalar_lea.vmem %s1, %s266
      %s268 = smul.u32 2, %s20
      %p269 = scmp.lt.s32.totalorder %s19, 1
      %s270 = scalar_select %p269, %s19, 1
      %p271 = scmp.lt.s32.totalorder %s268, 1
      %s272 = scalar_select %p271, %s268, 1
      %s273 = smul.addr %s270, 2
      %s274 = sadd.s32 %s272, %s273
      %s275 = scalar_lea.vmem %s2, %s274
      %s276 = smul.u32 2, %s20
      %s277 = smul.u32 2, %s20
      %p278 = scmp.lt.s32.totalorder %s19, 1
      %s279 = scalar_select %p278, %s19, 1
      %p280 = scmp.lt.s32.totalorder %s21, 0
      %s281 = scalar_select %p280, %s21, 0
      %p282 = scmp.lt.s32.totalorder %s277, 1
      %s283 = scalar_select %p282, %s277, 1
      %s284 = smul.addr %s281, 2
      %s285 = sadd.s32 %s283, %s284
      %s286 = smul.addr %s279, 2
      %s287 = sadd.s32 %s285, %s286
      %s288 = smul.addr %s287, 4
      %s289 = scalar_lea.vmem %s3, %s288
      %s290 = smul.u32 2, %s20
      %v291 = vld [vmem:[%s262] sm:$0xff]
      %v292 = vld [vmem:[%s267] sm:$0xf]
      %v293 = vld [vmem:[%s275] sm:$0x3]
      %295 = vset.pattern.permute.xlu0 0
      %296 = vperm.xlu0 %295, %v292
      %v297 = vpop.permute.xlu0 %296
      %v300 = vperm.slane %v293, 0
      %v301 = vperm.slane %v293, 1
      %v304 = vmul.f32 %v297, %v300
      %v305 = vmul.f32 %v297, %v301
      %v308 = vrot.slane %v305, 4
      %vm309 = vcmask 1043456
      %v310 = vsel %vm309, %v304, %v308
      %v312 = vadd.f32 %v291, %v310
      %313 = vst [vmem:[%s289] sm:$0xff] %v312
      %s314 = smul.u32 2, %s20
      %p315 = scmp.lt.s32.totalorder %s19, 1
      %s316 = scalar_select %p315, %s19, 1
      %p317 = scmp.lt.s32.totalorder %s21, 0
      %s318 = scalar_select %p317, %s21, 0
      %p319 = scmp.lt.s32.totalorder %s314, 1
      %s320 = scalar_select %p319, %s314, 1
      %s321 = smul.addr %s318, 2
      %s322 = sadd.s32 %s320, %s321
      %s323 = smul.addr %s316, 2
      %s324 = sadd.s32 %s322, %s323
      %s325 = smul.addr %s324, 4
      %s326 = scalar_lea.vmem %s3, %s325
      // Predicated region
      $region33: #{noise_injection_per_channel.1} parent=31 // pred_check
        %p327 = pneg %p139
      $region34: #{noise_injection_per_channel.1} parent=31 // pred_check_branch
        %329 = sbr.rel (%p327) target = $region36
      $region35: #{noise_injection_per_channel.1} parent=31 // pred_region
        %s330 = smul.u32 2, %s20
      $region36: #{noise_injection_per_channel.1} parent=31 // pred_fallthru
        _
    $region32: #{noise_injection_per_channel.1} parent=5 // pred_fallthru
      _
    %p331 = scmp.le.s32.totalorder 2, %s9
    // Predicated region
    $region37: #{noise_injection_per_channel.1} parent=5 // pred_check
      %p332 = pneg %p331
    $region38: #{noise_injection_per_channel.1} parent=5 // pred_check_branch
      %334 = sbr.rel (%p332) target = $region40
    $region39: #{noise_injection_per_channel.1} parent=5 // pred_region
      %s335 = ssub.s32 %s9, 2
      // Predicated region
      $region41: #{noise_injection_per_channel.1} parent=39 // pred_check
        %p336 = pneg %p145
      $region42: #{noise_injection_per_channel.1} parent=39 // pred_check_branch
        %338 = sbr.rel (%p336) target = $region44
      $region43: #{noise_injection_per_channel.1} parent=39 // pred_region
        %s339 = smul.u32 2, %s23
        %p340 = scmp.lt.s32.totalorder %s22, 1
        %s341 = scalar_select %p340, %s22, 1
        %p342 = scmp.lt.s32.totalorder %s24, 0
        %s343 = scalar_select %p342, %s24, 0
        %p344 = scmp.lt.s32.totalorder %s339, 1
        %s345 = scalar_select %p344, %s339, 1
        %s346 = smul.addr %s343, 2
        %s347 = sadd.s32 %s345, %s346
        %s348 = smul.addr %s341, 2
        %s349 = sadd.s32 %s347, %s348
        %s350 = smul.addr %s349, 4
        %s351 = scalar_lea.vmem %s3, %s350
      $region44: #{noise_injection_per_channel.1} parent=39 // pred_fallthru
        _
    $region40: #{noise_injection_per_channel.1} parent=5 // pred_fallthru
      _
  $region6: #{noise_injection_per_channel.1} parent=0 // loop_footer
    %s13 = sadd.s32 1, %s9
  $region7: #{noise_injection_per_channel.1} parent=0 // loop_footer_branch
    %8 = sbr.rel target = $region3
  $region8: #{noise_injection_per_channel.1} parent=0 // loop_exit
    _

</llo_original>
